<compile_context>
chip_gen: v7x
topology: tpu7x:2x2x1
jax: 0.10.0
libtpu: 0.0.40
codegen_flags: <defaults>
</compile_context>

<pallas_src>
import jax
import jax.numpy as jnp
from jax.experimental import pallas as pl
from jax.experimental.pallas import tpu as pltpu

EPS = 1e-5  # PyTorch GroupNorm default eps


# ---------------------------------------------------------------------------
# Fused kernel
# ---------------------------------------------------------------------------
def make_fused_mlp_kernel(n_hidden):
    """Kernel for n_hidden x (Linear -> GroupNorm -> Mish) + final Linear.

    Ref order: x, P, (w, b, gamma, beta) * n_hidden, w_final, b_final, out.
    """

    def kernel(x_ref, p_ref, *refs):
        o_ref = refs[-1]
        wf_ref, bf_ref = refs[-3], refs[-2]
        layer_refs = refs[: 4 * n_hidden]

        h = x_ref[...]            # bf16 (cast in the wrapper, half-size DMA)
        p = p_ref[...]            # (C, C) bf16 group-averaging matrix, resident

        # TODO(synk): if n_hidden grows beyond a handful of layers, switch to
        # stacked (n_hidden, C, C) weights + lax.fori_loop to bound live ranges.
        for li in range(n_hidden):
            w_ref, b_ref, g_ref, be_ref = layer_refs[4 * li: 4 * li + 4]

            # Linear (bf16 operands, f32 MXU accumulation).
            y = jnp.dot(h, w_ref[...], preferred_element_type=jnp.float32)
            y = y + b_ref[...]

            # GroupNorm stats: centered bf16 formulation, two small MXU dots
            # against the resident P.  P replicates each group's mean back to
            # all C lanes, so `mean` / `var` are already broadcast to (bm, C).
            mean = jnp.dot(y.astype(jnp.bfloat16), p,
                           preferred_element_type=jnp.float32)
            d = y - mean
            var = jnp.dot((d * d).astype(jnp.bfloat16), p,
                          preferred_element_type=jnp.float32)

            # Affine folded into the normalization scale (one mul + one FMA).
            s = g_ref[...] * jax.lax.rsqrt(var + EPS)
            z = d * s + be_ref[...]

            # Mish with one exp: tanh(softplus(z)) = n/(n+2), n = e^z (e^z + 2).
            # Clamp z at 20: there n/(n+2) == 1 in f32, so mish(z) == z exactly.
            e = jnp.exp(jnp.minimum(z, 20.0))
            n = e * (e + 2.0)
            h = (z * (n / (n + 2.0))).astype(jnp.bfloat16)

        # Final Linear (output lanes pre-padded to a multiple of 128 -> dense vst).
        o_ref[...] = (
            jnp.dot(h, wf_ref[...], preferred_element_type=jnp.float32) + bf_ref[...]
        )

    return kernel


# ---------------------------------------------------------------------------
# Wrapper
# ---------------------------------------------------------------------------
def make_group_avg_matrix(C, G):
    gs = C // G
    gid = jnp.arange(C) // gs
    # Entries are 0 or 1/gs (exactly representable in bf16 for power-of-2 gs).
    return ((gid[:, None] == gid[None, :]).astype(jnp.float32) / gs).astype(
        jnp.bfloat16
    )


def _round_up(v, m):
    return -(-v // m) * m


def _is_multi_tensorcore():
    """True on chips with >1 TensorCore (v7x); False on v5e/v6e / non-TPU."""
    try:
        kind = jax.devices()[0].device_kind.lower()
    except Exception:
        return False
    return "v7" in kind


def _pick_bm(batch, multi_tc):
    """Batch tile: as large as reasonable (cap 256 to fill the 256-wide MXUs on
    v6e/v7x), multiple of 16 (bf16 sublane packing).  Only force >= 2 grid
    steps on multi-TensorCore chips so the "parallel" axis can shard."""
    bm = min(256, max(16, _round_up(batch, 16)))
    if multi_tc and batch >= 32:
        bm = min(bm, max(16, (batch // 2) // 16 * 16))
    return bm


def mlp_forward_pallas(x, params, in_dim, n_groups):
    B = x.shape[0]
    # bf16 input so the only grid-varying DMA moves half the bytes.
    h = x.reshape(B, in_dim).astype(jnp.bfloat16)

    mid_dim = params[0]["w"].shape[1]
    out_dim = params[-1]["w"].shape[1]
    n_hidden = len(params) - 1

    # ---- batch tiling / padding -------------------------------------------
    bm = _pick_bm(B, _is_multi_tensorcore())
    B_pad = pl.cdiv(B, bm) * bm
    if B_pad != B:
        h = jnp.pad(h, ((0, B_pad - B), (0, 0)))

    # ---- lane-dense final output: pad out_dim to a multiple of 128 ---------
    dout_pad = _round_up(out_dim, 128)
    wf_pad = jnp.pad(
        params[-1]["w"], ((0, 0), (0, dout_pad - out_dim))
    ).astype(jnp.bfloat16)
    bf_pad = jnp.pad(params[-1]["b"], ((0, 0), (0, dout_pad - out_dim)))

    p_mat = make_group_avg_matrix(mid_dim, n_groups)

    # ---- operands & specs (weights = constant-index full blocks, resident) --
    args = [h, p_mat]
    in_specs = [
        pl.BlockSpec((bm, in_dim), lambda i: (i, 0)),
        pl.BlockSpec((mid_dim, mid_dim), lambda i: (0, 0)),
    ]
    for layer in params[:-1]:
        w_bf16 = layer["w"].astype(jnp.bfloat16)
        din = w_bf16.shape[0]
        args += [w_bf16, layer["b"], layer["gamma"], layer["beta"]]
        in_specs += [
            pl.BlockSpec((din, mid_dim), lambda i: (0, 0)),
            pl.BlockSpec((1, mid_dim), lambda i: (0, 0)),
            pl.BlockSpec((1, mid_dim), lambda i: (0, 0)),
            pl.BlockSpec((1, mid_dim), lambda i: (0, 0)),
        ]
    args += [wf_pad, bf_pad]
    in_specs += [
        pl.BlockSpec((mid_dim, dout_pad), lambda i: (0, 0)),
        pl.BlockSpec((1, dout_pad), lambda i: (0, 0)),
    ]
    # TODO(synk): single-buffer the constant-index operand specs with
    # pipeline_mode=pl.Buffered(1) once that is reliably supported by the
    # top-level pallas_call pipeline (halves their VMEM footprint on v7x).

    # ---- explicit VMEM budget (matters on v7x's 64 MiB as the model scales) -
    resident = 2 * mid_dim * mid_dim                               # P (bf16)
    resident += sum(
        l["w"].shape[0] * mid_dim * 2 + 3 * mid_dim * 4 for l in params[:-1]
    )
    resident += mid_dim * dout_pad * 2 + dout_pad * 4              # final W / b
    streamed = 2 * (bm * in_dim * 2 + bm * dout_pad * 4)           # dbl-buffered x / out
    working = 8 * bm * mid_dim * 4                                 # f32 intermediates
    vmem_budget = max(2 * (2 * resident + streamed + working), 32 * 1024 * 1024)

    out = pl.pallas_call(
        make_fused_mlp_kernel(n_hidden),
        out_shape=jax.ShapeDtypeStruct((B_pad, dout_pad), jnp.float32),
        grid_spec=pltpu.PrefetchScalarGridSpec(
            num_scalar_prefetch=0,
            grid=(B_pad // bm,),
            in_specs=in_specs,
            out_specs=pl.BlockSpec((bm, dout_pad), lambda i: (i, 0)),
        ),
        compiler_params=pltpu.CompilerParams(
            dimension_semantics=("parallel",),
            vmem_limit_bytes=int(vmem_budget),
        ),
    )(*args)
    return out[:B, :out_dim]


# ---------------------------------------------------------------------------
# Parameter setup / references
# ---------------------------------------------------------------------------
def init_mlp_params(key, in_dim, out_dim, mid_dim, n_layers, n_groups):
    """Deterministic synthetic params mirroring the module's shapes."""
    params = []
    dims = [in_dim] + [mid_dim] * (n_layers - 1)
    for li in range(n_layers - 1):
        key, k_w, k_b = jax.random.split(key, 3)
        din = dims[li]
        w = jax.random.normal(k_w, (din, mid_dim), jnp.float32) / jnp.sqrt(din)
        b = jax.random.normal(k_b, (1, mid_dim), jnp.float32) * 0.01
        gamma = jnp.ones((1, mid_dim), jnp.float32)   # GroupNorm affine init
        beta = jnp.zeros((1, mid_dim), jnp.float32)
        params.append(dict(w=w, b=b, gamma=gamma, beta=beta))
    key, k_w, k_b = jax.random.split(key, 3)
    wf = jax.random.normal(k_w, (mid_dim, out_dim), jnp.float32) / jnp.sqrt(mid_dim)
    bf = jax.random.normal(k_b, (1, out_dim), jnp.float32) * 0.01
    params.append(dict(w=wf, b=bf))
    return params


def mlp_forward_matched_ref(x, params, in_dim, n_groups):
    """Pure-JAX reference mirroring the kernel numerics exactly (bf16 matmul
    operands, centered bf16 GroupNorm stats via the same P matrix, exact
    divide in Mish) — the primary correctness check."""
    B = x.shape[0]
    mid_dim = params[0]["w"].shape[1]
    p = make_group_avg_matrix(mid_dim, n_groups)
    h = x.reshape(B, in_dim).astype(jnp.bfloat16)
    for layer in params[:-1]:
        w = layer["w"].astype(jnp.bfloat16)
        y = jnp.dot(h, w, preferred_element_type=jnp.float32) + layer["b"]
        mean = jnp.dot(y.astype(jnp.bfloat16), p, preferred_element_type=jnp.float32)
        d = y - mean
        var = jnp.dot((d * d).astype(jnp.bfloat16), p,
                      preferred_element_type=jnp.float32)
        s = layer["gamma"] * jax.lax.rsqrt(var + EPS)
        z = d * s + layer["beta"]
        e = jnp.exp(jnp.minimum(z, 20.0))
        n = e * (e + 2.0)
        h = (z * (n / (n + 2.0))).astype(jnp.bfloat16)
    wf = params[-1]["w"].astype(jnp.bfloat16)
    return jnp.dot(h, wf, preferred_element_type=jnp.float32) + params[-1]["b"]


def mlp_forward_f32_ref(x, params, in_dim, n_groups):
    """Pure-f32 PyTorch-semantics reference (informational comparison)."""
    B = x.shape[0]
    h = x.reshape(B, in_dim).astype(jnp.float32)
    for layer in params[:-1]:
        y = h @ layer["w"] + layer["b"]
        C = y.shape[1]
        g = y.reshape(B, n_groups, C // n_groups)
        mean = g.mean(axis=-1, keepdims=True)
        var = ((g - mean) ** 2).mean(axis=-1, keepdims=True)
        z = ((g - mean) / jnp.sqrt(var + EPS)).reshape(B, C)
        z = z * layer["gamma"] + layer["beta"]
        h = z * jnp.tanh(jax.nn.softplus(z))
    return h @ params[-1]["w"] + params[-1]["b"]


# ---------------------------------------------------------------------------
if __name__ == "__main__":
    B = 64
    in_dim = 32        # input arrives as (B, 4, 8) and is flattened to (B, 32)
    mid_dim = 128
    out_dim = 16
    n_layers = 3
    n_groups = 8

    key = jax.random.PRNGKey(0)
    key, k_x = jax.random.split(key)
    x = jax.random.normal(k_x, (B, 4, 8), jnp.float32)
    params = init_mlp_params(key, in_dim, out_dim, mid_dim, n_layers, n_groups)

    fwd = jax.jit(mlp_forward_pallas, static_argnames=("in_dim", "n_groups"))
    out = jax.block_until_ready(fwd(x, params, in_dim=in_dim, n_groups=n_groups))
    assert out.shape == (B, out_dim)

    # Primary check: kernel vs a reference implementing the same math
    # (bf16 matmul operands + bf16 centered stats, f32 everything else).
    ref = mlp_forward_matched_ref(x, params, in_dim, n_groups)
    err = jnp.max(jnp.abs(out - ref))
    assert jnp.allclose(out, ref, atol=1e-2, rtol=1e-2), f"max abs err {err}"

    # Informational: deviation from the pure-f32 PyTorch-semantics forward
    # (difference is dominated by the bf16 MXU operand casts).
    ref32 = mlp_forward_f32_ref(x, params, in_dim, n_groups)
    print(f"max |pallas - matched_ref| = {float(err):.3e}, "
          f"max |pallas - f32_ref| = {float(jnp.max(jnp.abs(out - ref32))):.3e}")

    print("KERNEL_OK")
</pallas_src>

<mosaic_0001>
module attributes {stable_mosaic.version = 11 : i64} {
  func.func @kernel(%arg0: i32, %arg1: memref<64x32xbf16, #tpu.memory_space<vmem>>, %arg2: memref<128x128xbf16, #tpu.memory_space<vmem>>, %arg3: memref<32x128xbf16, #tpu.memory_space<vmem>>, %arg4: memref<1x128xf32, #tpu.memory_space<vmem>>, %arg5: memref<1x128xf32, #tpu.memory_space<vmem>>, %arg6: memref<1x128xf32, #tpu.memory_space<vmem>>, %arg7: memref<128x128xbf16, #tpu.memory_space<vmem>>, %arg8: memref<1x128xf32, #tpu.memory_space<vmem>>, %arg9: memref<1x128xf32, #tpu.memory_space<vmem>>, %arg10: memref<1x128xf32, #tpu.memory_space<vmem>>, %arg11: memref<128x128xbf16, #tpu.memory_space<vmem>>, %arg12: memref<1x128xf32, #tpu.memory_space<vmem>>, %arg13: memref<64x128xf32, #tpu.memory_space<vmem>>) attributes {dimension_semantics = [#tpu.dimension_semantics<parallel>], iteration_bounds = array<i64: 1>, scalar_prefetch = 0 : i64, scratch_operands = 0 : i64, tpu.core_type = #tpu.core_type<tc>, window_params = [{transform_indices = @transform_0, window_bounds = array<i64: 64, 32>}, {pipeline_mode = #tpu.pipeline_mode<synchronous>, transform_indices = @transform_1, window_bounds = array<i64: 128, 128>}, {pipeline_mode = #tpu.pipeline_mode<synchronous>, transform_indices = @transform_2, window_bounds = array<i64: 32, 128>}, {pipeline_mode = #tpu.pipeline_mode<synchronous>, transform_indices = @transform_3, window_bounds = array<i64: 1, 128>}, {pipeline_mode = #tpu.pipeline_mode<synchronous>, transform_indices = @transform_4, window_bounds = array<i64: 1, 128>}, {pipeline_mode = #tpu.pipeline_mode<synchronous>, transform_indices = @transform_5, window_bounds = array<i64: 1, 128>}, {pipeline_mode = #tpu.pipeline_mode<synchronous>, transform_indices = @transform_6, window_bounds = array<i64: 128, 128>}, {pipeline_mode = #tpu.pipeline_mode<synchronous>, transform_indices = @transform_7, window_bounds = array<i64: 1, 128>}, {pipeline_mode = #tpu.pipeline_mode<synchronous>, transform_indices = @transform_8, window_bounds = array<i64: 1, 128>}, {pipeline_mode = #tpu.pipeline_mode<synchronous>, transform_indices = @transform_9, window_bounds = array<i64: 1, 128>}, {pipeline_mode = #tpu.pipeline_mode<synchronous>, transform_indices = @transform_10, window_bounds = array<i64: 128, 128>}, {pipeline_mode = #tpu.pipeline_mode<synchronous>, transform_indices = @transform_11, window_bounds = array<i64: 1, 128>}, {transform_indices = @transform_12, window_bounds = array<i64: 64, 128>}]} {
    %c0 = arith.constant 0 : index
    %c0_0 = arith.constant 0 : index
    %0 = vector.load %arg1[%c0, %c0_0] : memref<64x32xbf16, #tpu.memory_space<vmem>>, vector<64x32xbf16>
    %c0_1 = arith.constant 0 : index
    %c0_2 = arith.constant 0 : index
    %1 = vector.load %arg2[%c0_1, %c0_2] : memref<128x128xbf16, #tpu.memory_space<vmem>>, vector<128x128xbf16>
    %c0_3 = arith.constant 0 : index
    %c0_4 = arith.constant 0 : index
    %2 = vector.load %arg3[%c0_3, %c0_4] : memref<32x128xbf16, #tpu.memory_space<vmem>>, vector<32x128xbf16>
    %cst = arith.constant dense<0.000000e+00> : vector<64x128xf32>
    %3 = tpu.matmul %0, %2, %cst {dimension_numbers = #tpu.dot_dimension_numbers<[1], [0], [0], [1], [0, 0, 1, 1], [], []>} : vector<64x32xbf16>, vector<32x128xbf16>, vector<64x128xf32> -> vector<64x128xf32>
    %c0_5 = arith.constant 0 : index
    %c0_6 = arith.constant 0 : index
    %4 = vector.load %arg4[%c0_5, %c0_6] : memref<1x128xf32, #tpu.memory_space<vmem>>, vector<1x128xf32>
    %5 = vector.broadcast %4 : vector<1x128xf32> to vector<64x128xf32>
    %6 = arith.addf %3, %5 : vector<64x128xf32>
    %7 = arith.truncf %6 : vector<64x128xf32> to vector<64x128xbf16>
    %cst_7 = arith.constant dense<0.000000e+00> : vector<64x128xf32>
    %8 = tpu.matmul %7, %1, %cst_7 {dimension_numbers = #tpu.dot_dimension_numbers<[1], [0], [0], [1], [0, 0, 1, 1], [], []>} : vector<64x128xbf16>, vector<128x128xbf16>, vector<64x128xf32> -> vector<64x128xf32>
    %9 = arith.subf %6, %8 : vector<64x128xf32>
    %10 = arith.mulf %9, %9 : vector<64x128xf32>
    %11 = arith.truncf %10 : vector<64x128xf32> to vector<64x128xbf16>
    %cst_8 = arith.constant dense<0.000000e+00> : vector<64x128xf32>
    %12 = tpu.matmul %11, %1, %cst_8 {dimension_numbers = #tpu.dot_dimension_numbers<[1], [0], [0], [1], [0, 0, 1, 1], [], []>} : vector<64x128xbf16>, vector<128x128xbf16>, vector<64x128xf32> -> vector<64x128xf32>
    %c0_9 = arith.constant 0 : index
    %c0_10 = arith.constant 0 : index
    %13 = vector.load %arg5[%c0_9, %c0_10] : memref<1x128xf32, #tpu.memory_space<vmem>>, vector<1x128xf32>
    %cst_11 = arith.constant 9.99999974E-6 : f32
    %14 = vector.broadcast %cst_11 : f32 to vector<64x128xf32>
    %15 = arith.addf %12, %14 : vector<64x128xf32>
    %16 = math.rsqrt %15 : vector<64x128xf32>
    %17 = vector.broadcast %13 : vector<1x128xf32> to vector<64x128xf32>
    %18 = arith.mulf %17, %16 : vector<64x128xf32>
    %19 = arith.mulf %9, %18 : vector<64x128xf32>
    %c0_12 = arith.constant 0 : index
    %c0_13 = arith.constant 0 : index
    %20 = vector.load %arg6[%c0_12, %c0_13] : memref<1x128xf32, #tpu.memory_space<vmem>>, vector<1x128xf32>
    %21 = vector.broadcast %20 : vector<1x128xf32> to vector<64x128xf32>
    %22 = arith.addf %19, %21 : vector<64x128xf32>
    %cst_14 = arith.constant 2.000000e+01 : f32
    %23 = vector.broadcast %cst_14 : f32 to vector<64x128xf32>
    %24 = arith.minimumf %22, %23 : vector<64x128xf32>
    %25 = math.exp %24 : vector<64x128xf32>
    %cst_15 = arith.constant 2.000000e+00 : f32
    %26 = vector.broadcast %cst_15 : f32 to vector<64x128xf32>
    %27 = arith.addf %25, %26 : vector<64x128xf32>
    %28 = arith.mulf %25, %27 : vector<64x128xf32>
    %cst_16 = arith.constant 2.000000e+00 : f32
    %29 = vector.broadcast %cst_16 : f32 to vector<64x128xf32>
    %30 = arith.addf %28, %29 : vector<64x128xf32>
    %31 = arith.divf %28, %30 : vector<64x128xf32>
    %32 = arith.mulf %22, %31 : vector<64x128xf32>
    %33 = arith.truncf %32 : vector<64x128xf32> to vector<64x128xbf16>
    %c0_17 = arith.constant 0 : index
    %c0_18 = arith.constant 0 : index
    %34 = vector.load %arg7[%c0_17, %c0_18] : memref<128x128xbf16, #tpu.memory_space<vmem>>, vector<128x128xbf16>
    %cst_19 = arith.constant dense<0.000000e+00> : vector<64x128xf32>
    %35 = tpu.matmul %33, %34, %cst_19 {dimension_numbers = #tpu.dot_dimension_numbers<[1], [0], [0], [1], [0, 0, 1, 1], [], []>} : vector<64x128xbf16>, vector<128x128xbf16>, vector<64x128xf32> -> vector<64x128xf32>
    %c0_20 = arith.constant 0 : index
    %c0_21 = arith.constant 0 : index
    %36 = vector.load %arg8[%c0_20, %c0_21] : memref<1x128xf32, #tpu.memory_space<vmem>>, vector<1x128xf32>
    %37 = vector.broadcast %36 : vector<1x128xf32> to vector<64x128xf32>
    %38 = arith.addf %35, %37 : vector<64x128xf32>
    %39 = arith.truncf %38 : vector<64x128xf32> to vector<64x128xbf16>
    %cst_22 = arith.constant dense<0.000000e+00> : vector<64x128xf32>
    %40 = tpu.matmul %39, %1, %cst_22 {dimension_numbers = #tpu.dot_dimension_numbers<[1], [0], [0], [1], [0, 0, 1, 1], [], []>} : vector<64x128xbf16>, vector<128x128xbf16>, vector<64x128xf32> -> vector<64x128xf32>
    %41 = arith.subf %38, %40 : vector<64x128xf32>
    %42 = arith.mulf %41, %41 : vector<64x128xf32>
    %43 = arith.truncf %42 : vector<64x128xf32> to vector<64x128xbf16>
    %cst_23 = arith.constant dense<0.000000e+00> : vector<64x128xf32>
    %44 = tpu.matmul %43, %1, %cst_23 {dimension_numbers = #tpu.dot_dimension_numbers<[1], [0], [0], [1], [0, 0, 1, 1], [], []>} : vector<64x128xbf16>, vector<128x128xbf16>, vector<64x128xf32> -> vector<64x128xf32>
    %c0_24 = arith.constant 0 : index
    %c0_25 = arith.constant 0 : index
    %45 = vector.load %arg9[%c0_24, %c0_25] : memref<1x128xf32, #tpu.memory_space<vmem>>, vector<1x128xf32>
    %cst_26 = arith.constant 9.99999974E-6 : f32
    %46 = vector.broadcast %cst_26 : f32 to vector<64x128xf32>
    %47 = arith.addf %44, %46 : vector<64x128xf32>
    %48 = math.rsqrt %47 : vector<64x128xf32>
    %49 = vector.broadcast %45 : vector<1x128xf32> to vector<64x128xf32>
    %50 = arith.mulf %49, %48 : vector<64x128xf32>
    %51 = arith.mulf %41, %50 : vector<64x128xf32>
    %c0_27 = arith.constant 0 : index
    %c0_28 = arith.constant 0 : index
    %52 = vector.load %arg10[%c0_27, %c0_28] : memref<1x128xf32, #tpu.memory_space<vmem>>, vector<1x128xf32>
    %53 = vector.broadcast %52 : vector<1x128xf32> to vector<64x128xf32>
    %54 = arith.addf %51, %53 : vector<64x128xf32>
    %cst_29 = arith.constant 2.000000e+01 : f32
    %55 = vector.broadcast %cst_29 : f32 to vector<64x128xf32>
    %56 = arith.minimumf %54, %55 : vector<64x128xf32>
    %57 = math.exp %56 : vector<64x128xf32>
    %cst_30 = arith.constant 2.000000e+00 : f32
    %58 = vector.broadcast %cst_30 : f32 to vector<64x128xf32>
    %59 = arith.addf %57, %58 : vector<64x128xf32>
    %60 = arith.mulf %57, %59 : vector<64x128xf32>
    %cst_31 = arith.constant 2.000000e+00 : f32
    %61 = vector.broadcast %cst_31 : f32 to vector<64x128xf32>
    %62 = arith.addf %60, %61 : vector<64x128xf32>
    %63 = arith.divf %60, %62 : vector<64x128xf32>
    %64 = arith.mulf %54, %63 : vector<64x128xf32>
    %65 = arith.truncf %64 : vector<64x128xf32> to vector<64x128xbf16>
    %c0_32 = arith.constant 0 : index
    %c0_33 = arith.constant 0 : index
    %66 = vector.load %arg11[%c0_32, %c0_33] : memref<128x128xbf16, #tpu.memory_space<vmem>>, vector<128x128xbf16>
    %cst_34 = arith.constant dense<0.000000e+00> : vector<64x128xf32>
    %67 = tpu.matmul %65, %66, %cst_34 {dimension_numbers = #tpu.dot_dimension_numbers<[1], [0], [0], [1], [0, 0, 1, 1], [], []>} : vector<64x128xbf16>, vector<128x128xbf16>, vector<64x128xf32> -> vector<64x128xf32>
    %c0_35 = arith.constant 0 : index
    %c0_36 = arith.constant 0 : index
    %68 = vector.load %arg12[%c0_35, %c0_36] : memref<1x128xf32, #tpu.memory_space<vmem>>, vector<1x128xf32>
    %69 = vector.broadcast %68 : vector<1x128xf32> to vector<64x128xf32>
    %70 = arith.addf %67, %69 : vector<64x128xf32>
    %c0_37 = arith.constant 0 : index
    %c0_38 = arith.constant 0 : index
    %71 = vector.load %arg13[%c0_37, %c0_38] : memref<64x128xf32, #tpu.memory_space<vmem>>, vector<64x128xf32>
    tpu.vector_store %arg13[%c0_37, %c0_38], %70 {strides = array<i32>} : memref<64x128xf32, #tpu.memory_space<vmem>>, vector<64x128xf32>,
    return
  }
  func.func @transform_0(%arg0: i32) -> (i32, i32) {
    %c0_i32 = arith.constant 0 : i32
    %c0_i32_0 = arith.constant 0 : i32
    return %arg0, %c0_i32 : i32, i32
  }
  func.func @transform_1(%arg0: i32) -> (i32, i32) {
    %c0_i32 = arith.constant 0 : i32
    %c0_i32_0 = arith.constant 0 : i32
    %c0_i32_1 = arith.constant 0 : i32
    return %c0_i32, %c0_i32_0 : i32, i32
  }
  func.func @transform_2(%arg0: i32) -> (i32, i32) {
    %c0_i32 = arith.constant 0 : i32
    %c0_i32_0 = arith.constant 0 : i32
    %c0_i32_1 = arith.constant 0 : i32
    return %c0_i32, %c0_i32_0 : i32, i32
  }
  func.func @transform_3(%arg0: i32) -> (i32, i32) {
    %c0_i32 = arith.constant 0 : i32
    %c0_i32_0 = arith.constant 0 : i32
    %c0_i32_1 = arith.constant 0 : i32
    return %c0_i32, %c0_i32_0 : i32, i32
  }
  func.func @transform_4(%arg0: i32) -> (i32, i32) {
    %c0_i32 = arith.constant 0 : i32
    %c0_i32_0 = arith.constant 0 : i32
    %c0_i32_1 = arith.constant 0 : i32
    return %c0_i32, %c0_i32_0 : i32, i32
  }
  func.func @transform_5(%arg0: i32) -> (i32, i32) {
    %c0_i32 = arith.constant 0 : i32
    %c0_i32_0 = arith.constant 0 : i32
    %c0_i32_1 = arith.constant 0 : i32
    return %c0_i32, %c0_i32_0 : i32, i32
  }
  func.func @transform_6(%arg0: i32) -> (i32, i32) {
    %c0_i32 = arith.constant 0 : i32
    %c0_i32_0 = arith.constant 0 : i32
    %c0_i32_1 = arith.constant 0 : i32
    return %c0_i32, %c0_i32_0 : i32, i32
  }
  func.func @transform_7(%arg0: i32) -> (i32, i32) {
    %c0_i32 = arith.constant 0 : i32
    %c0_i32_0 = arith.constant 0 : i32
    %c0_i32_1 = arith.constant 0 : i32
    return %c0_i32, %c0_i32_0 : i32, i32
  }
  func.func @transform_8(%arg0: i32) -> (i32, i32) {
    %c0_i32 = arith.constant 0 : i32
    %c0_i32_0 = arith.constant 0 : i32
    %c0_i32_1 = arith.constant 0 : i32
    return %c0_i32, %c0_i32_0 : i32, i32
  }
  func.func @transform_9(%arg0: i32) -> (i32, i32) {
    %c0_i32 = arith.constant 0 : i32
    %c0_i32_0 = arith.constant 0 : i32
    %c0_i32_1 = arith.constant 0 : i32
    return %c0_i32, %c0_i32_0 : i32, i32
  }
  func.func @transform_10(%arg0: i32) -> (i32, i32) {
    %c0_i32 = arith.constant 0 : i32
    %c0_i32_0 = arith.constant 0 : i32
    %c0_i32_1 = arith.constant 0 : i32
    return %c0_i32, %c0_i32_0 : i32, i32
  }
  func.func @transform_11(%arg0: i32) -> (i32, i32) {
    %c0_i32 = arith.constant 0 : i32
    %c0_i32_0 = arith.constant 0 : i32
    %c0_i32_1 = arith.constant 0 : i32
    return %c0_i32, %c0_i32_0 : i32, i32
  }
  func.func @transform_12(%arg0: i32) -> (i32, i32) {
    %c0_i32 = arith.constant 0 : i32
    %c0_i32_0 = arith.constant 0 : i32
    return %arg0, %c0_i32 : i32, i32
  }
}

</mosaic_0001>

<llo_original>
// kernel: mlp_forward_pallas.1
$region0: #{mlp_forward_pallas.1}
  #allocation0 [shape = 'u32[]', space=smem, size = 0x4, offset = 0x4, fixed_abs, tag = 'smem constant byte address 0x4 - core index']
  #allocation1 [shape = 'u32[144,128]{1,0:T(1,128)}', space=vmem, size = 0x12000, scoped, tag = 'internal scratch']
  %s0 = inlined_call_operand.vmem [shape: bf16[64,32], index: 0, kind: input, shape index: {}]
  %s1 = inlined_call_operand.vmem [shape: bf16[128,128], index: 1, kind: input, shape index: {}]
  %s2 = inlined_call_operand.vmem [shape: bf16[32,128], index: 2, kind: input, shape index: {}]
  %s3 = inlined_call_operand.vmem [shape: f32[1,128], index: 3, kind: input, shape index: {}]
  %s4 = inlined_call_operand.vmem [shape: f32[1,128], index: 4, kind: input, shape index: {}]
  %s5 = inlined_call_operand.vmem [shape: f32[1,128], index: 5, kind: input, shape index: {}]
  %s6 = inlined_call_operand.vmem [shape: bf16[128,128], index: 6, kind: input, shape index: {}]
  %s7 = inlined_call_operand.vmem [shape: f32[1,128], index: 7, kind: input, shape index: {}]
  %s8 = inlined_call_operand.vmem [shape: f32[1,128], index: 8, kind: input, shape index: {}]
  %s9 = inlined_call_operand.vmem [shape: f32[1,128], index: 9, kind: input, shape index: {}]
  %s10 = inlined_call_operand.vmem [shape: bf16[128,128], index: 10, kind: input, shape index: {}]
  %s11 = inlined_call_operand.vmem [shape: f32[1,128], index: 11, kind: input, shape index: {}]
  %s12 = inlined_call_operand.vmem [shape: f32[64,128], index: 12, kind: output, shape index: {}]
  %s13 = sld [smem:[#allocation0]]
  $region58: #{mlp_forward_pallas.1} parent=0
    _
  %s15 = ssub.s32 1, %s13
  %s16 = scalar_select 0, %s15, %s13
  // Predicated region
  $region2: #{mlp_forward_pallas.1} parent=0 // pred_check
    _
  $region3: #{mlp_forward_pallas.1} parent=0 // pred_check_branch
    %18 = sbr.rel (0) target = $region5
  $region4: #{mlp_forward_pallas.1} parent=0 // pred_region
    _
  $region5: #{mlp_forward_pallas.1} parent=0 // pred_fallthru
    _
  // Predicated region
  $region6: #{mlp_forward_pallas.1} parent=0 // pred_check
    _
  $region7: #{mlp_forward_pallas.1} parent=0 // pred_check_branch
    %20 = sbr.rel (0) target = $region9
  $region8: #{mlp_forward_pallas.1} parent=0 // pred_region
    _
  $region9: #{mlp_forward_pallas.1} parent=0 // pred_fallthru
    _
  // Predicated region
  $region10: #{mlp_forward_pallas.1} parent=0 // pred_check
    _
  $region11: #{mlp_forward_pallas.1} parent=0 // pred_check_branch
    %22 = sbr.rel (0) target = $region13
  $region12: #{mlp_forward_pallas.1} parent=0 // pred_region
    _
  $region13: #{mlp_forward_pallas.1} parent=0 // pred_fallthru
    _
  // Predicated region
  $region14: #{mlp_forward_pallas.1} parent=0 // pred_check
    _
  $region15: #{mlp_forward_pallas.1} parent=0 // pred_check_branch
    %24 = sbr.rel (0) target = $region17
  $region16: #{mlp_forward_pallas.1} parent=0 // pred_region
    _
  $region17: #{mlp_forward_pallas.1} parent=0 // pred_fallthru
    _
  // Predicated region
  $region18: #{mlp_forward_pallas.1} parent=0 // pred_check
    _
  $region19: #{mlp_forward_pallas.1} parent=0 // pred_check_branch
    %26 = sbr.rel (0) target = $region21
  $region20: #{mlp_forward_pallas.1} parent=0 // pred_region
    _
  $region21: #{mlp_forward_pallas.1} parent=0 // pred_fallthru
    _
  // Predicated region
  $region22: #{mlp_forward_pallas.1} parent=0 // pred_check
    _
  $region23: #{mlp_forward_pallas.1} parent=0 // pred_check_branch
    %28 = sbr.rel (0) target = $region25
  $region24: #{mlp_forward_pallas.1} parent=0 // pred_region
    _
  $region25: #{mlp_forward_pallas.1} parent=0 // pred_fallthru
    _
  // Predicated region
  $region26: #{mlp_forward_pallas.1} parent=0 // pred_check
    _
  $region27: #{mlp_forward_pallas.1} parent=0 // pred_check_branch
    %30 = sbr.rel (0) target = $region29
  $region28: #{mlp_forward_pallas.1} parent=0 // pred_region
    _
  $region29: #{mlp_forward_pallas.1} parent=0 // pred_fallthru
    _
  // Predicated region
  $region30: #{mlp_forward_pallas.1} parent=0 // pred_check
    _
  $region31: #{mlp_forward_pallas.1} parent=0 // pred_check_branch
    %32 = sbr.rel (0) target = $region33
  $region32: #{mlp_forward_pallas.1} parent=0 // pred_region
    _
  $region33: #{mlp_forward_pallas.1} parent=0 // pred_fallthru
    _
  // Predicated region
  $region34: #{mlp_forward_pallas.1} parent=0 // pred_check
    _
  $region35: #{mlp_forward_pallas.1} parent=0 // pred_check_branch
    %34 = sbr.rel (0) target = $region37
  $region36: #{mlp_forward_pallas.1} parent=0 // pred_region
    _
  $region37: #{mlp_forward_pallas.1} parent=0 // pred_fallthru
    _
  // Predicated region
  $region38: #{mlp_forward_pallas.1} parent=0 // pred_check
    _
  $region39: #{mlp_forward_pallas.1} parent=0 // pred_check_branch
    %36 = sbr.rel (0) target = $region41
  $region40: #{mlp_forward_pallas.1} parent=0 // pred_region
    _
  $region41: #{mlp_forward_pallas.1} parent=0 // pred_fallthru
    _
  // Predicated region
  $region42: #{mlp_forward_pallas.1} parent=0 // pred_check
    _
  $region43: #{mlp_forward_pallas.1} parent=0 // pred_check_branch
    %38 = sbr.rel (0) target = $region45
  $region44: #{mlp_forward_pallas.1} parent=0 // pred_region
    _
  $region45: #{mlp_forward_pallas.1} parent=0 // pred_fallthru
    _
  // Predicated region
  $region46: #{mlp_forward_pallas.1} parent=0 // pred_check
    _
  $region47: #{mlp_forward_pallas.1} parent=0 // pred_check_branch
    %40 = sbr.rel (0) target = $region49
  $region48: #{mlp_forward_pallas.1} parent=0 // pred_region
    _
  $region49: #{mlp_forward_pallas.1} parent=0 // pred_fallthru
    _
  %v42 = vld [vmem:[%s0] sm:$0xf]
  %v43 = vld [vmem:[%s0 + $0x4] sm:$0xf]
  %v44 = vld [vmem:[%s0 + $0x8] sm:$0xf]
  %v45 = vld [vmem:[%s0 + $0xc] sm:$0xf]
  %v46 = vld [vmem:[%s0 + $0x10] sm:$0xf]
  %v47 = vld [vmem:[%s0 + $0x14] sm:$0xf]
  %v48 = vld [vmem:[%s0 + $0x18] sm:$0xf]
  %v49 = vld [vmem:[%s0 + $0x1c] sm:$0xf]
  %v50 = vld [vmem:[%s1] sm:$0xf]
  %v51 = vld [vmem:[%s1 + $0x4] sm:$0xf]
  %v52 = vld [vmem:[%s1 + $0x8] sm:$0xf]
  %v53 = vld [vmem:[%s1 + $0xc] sm:$0xf]
  %v54 = vld [vmem:[%s1 + $0x10] sm:$0xf]
  %v55 = vld [vmem:[%s1 + $0x14] sm:$0xf]
  %v56 = vld [vmem:[%s1 + $0x18] sm:$0xf]
  %v57 = vld [vmem:[%s1 + $0x1c] sm:$0xf]
  %v58 = vld [vmem:[%s1 + $0x20] sm:$0xf]
  %v59 = vld [vmem:[%s1 + $0x24] sm:$0xf]
  %v60 = vld [vmem:[%s1 + $0x28] sm:$0xf]
  %v61 = vld [vmem:[%s1 + $0x2c] sm:$0xf]
  %v62 = vld [vmem:[%s1 + $0x30] sm:$0xf]
  %v63 = vld [vmem:[%s1 + $0x34] sm:$0xf]
  %v64 = vld [vmem:[%s1 + $0x38] sm:$0xf]
  %v65 = vld [vmem:[%s1 + $0x3c] sm:$0xf]
  %v66 = vld [vmem:[%s2] sm:$0xf]
  %v67 = vld [vmem:[%s2 + $0x4] sm:$0xf]
  %v68 = vld [vmem:[%s2 + $0x8] sm:$0xf]
  %v69 = vld [vmem:[%s2 + $0xc] sm:$0xf]
  %v70 = vld [vmem:[%s3] sm:$0x1]
  %v72 = vlaneseq
  %v73 = vshrl.u32 %v72, 7
  %v74 = vsub.s32 0, %v73
  %v75 = vrot.slane %v70, %v74
  %v85 = vunpack.c.l.b16 %v42
  %v86 = vunpack.c.l.b16 %v43
  %v87 = vunpack.c.l.b16 %v44
  %v88 = vunpack.c.l.b16 %v45
  %v89 = vunpack.c.l.b16 %v46
  %v90 = vunpack.c.l.b16 %v47
  %v91 = vunpack.c.l.b16 %v48
  %v92 = vunpack.c.l.b16 %v49
  %v93 = vpack.c.b16 %v86, %v85
  %v94 = vpack.c.b16 %v88, %v87
  %v95 = vpack.c.b16 %v90, %v89
  %v96 = vpack.c.b16 %v92, %v91
  %v101 = vunpack.c.l.b16 %v66
  %v102 = vunpack.c.l.b16 %v67
  %v103 = vunpack.c.l.b16 %v68
  %v104 = vunpack.c.l.b16 %v69
  %v105 = vpack.c.b16 %v102, %v101
  %v106 = vpack.c.b16 %v104, %v103
  %vm109 = vcmask 261120
  %v111 = vsel %vm109, %v93, 0
  %v114 = vsel %vm109, %v94, 0
  %v117 = vsel %vm109, %v95, 0
  %v120 = vsel %vm109, %v96, 0
  %122 = vmatprep.subr.bf16.mxu0 0
  %123 = vmatpush1.bf16.msra.mxu0 %v105
  %124 = vmatprep.subr.bf16.mxu0 0
  %125 = vmatpush1.bf16.msra.mxu0 %v106
  %126 = vmatprep.subr.bf16.mxu0 0
  %127 = vmatpush1.bf16.msra.mxu0 0
  %128 = vmatprep.subr.bf16.mxu0 0
  %129 = vmatpush1.bf16.msra.mxu0 0
  %130 = vmatprep.subr.bf16.mxu0 0
  %131 = vmatpush1.bf16.msra.mxu0 0
  %132 = vmatprep.subr.bf16.mxu0 0
  %133 = vmatpush1.bf16.msra.mxu0 0
  %134 = vmatprep.subr.bf16.mxu0 0
  %135 = vmatpush1.bf16.msra.mxu0 0
  %136 = vmatprep.subr.bf16.mxu0 0
  %137 = vmatpush1.bf16.msra.mxu0 0
  %138 = vmatprep.subr.bf16.mxu0 0
  %139 = vmatpush1.bf16.msra.mxu0 0
  %140 = vmatprep.subr.bf16.mxu0 0
  %141 = vmatpush1.bf16.msra.mxu0 0
  %142 = vmatprep.subr.bf16.mxu0 0
  %143 = vmatpush1.bf16.msra.mxu0 0
  %144 = vmatprep.subr.bf16.mxu0 0
  %145 = vmatpush1.bf16.msra.mxu0 0
  %146 = vmatprep.subr.bf16.mxu0 0
  %147 = vmatpush1.bf16.msra.mxu0 0
  %148 = vmatprep.subr.bf16.mxu0 0
  %149 = vmatpush1.bf16.msra.mxu0 0
  %150 = vmatprep.subr.bf16.mxu0 0
  %151 = vmatpush1.bf16.msra.mxu0 0
  %152 = vmatprep.subr.bf16.mxu0 0
  %153 = vmatpush1.bf16.msra.mxu0 0
  %154 = vmatprep.mubr.bf16.mxu0 0
  %155 = vmatmul.mubr.bf16.gmra.mrb[0].mxu0 %v111
  %v156 = vpop.f32.mrb[0].mxu0
  %v157 = vadd.f32 %v75, %v156
  %v158 = vpop.f32.mrb[0].mxu0
  %v159 = vpop.f32.mrb[0].mxu0
  %v160 = vadd.f32 %v75, %v159
  %v161 = vpop.f32.mrb[0].mxu0
  %162 = vmatprep.mubr.bf16.mxu0 0
  %163 = vmatmul.mubr.bf16.gmra.mrb[0].mxu0 %v114
  %v164 = vpop.f32.mrb[0].mxu0
  %v165 = vadd.f32 %v75, %v164
  %v166 = vpop.f32.mrb[0].mxu0
  %v167 = vpop.f32.mrb[0].mxu0
  %v168 = vadd.f32 %v75, %v167
  %v169 = vpop.f32.mrb[0].mxu0
  %170 = vmatprep.mubr.bf16.mxu0 0
  %171 = vmatmul.mubr.bf16.gmra.mrb[0].mxu0 %v117
  %v172 = vpop.f32.mrb[0].mxu0
  %v173 = vadd.f32 %v75, %v172
  %v174 = vpop.f32.mrb[0].mxu0
  %v175 = vpop.f32.mrb[0].mxu0
  %v176 = vadd.f32 %v75, %v175
  %v177 = vpop.f32.mrb[0].mxu0
  %178 = vmatprep.mubr.bf16.mxu0 0
  %179 = vmatmul.mubr.bf16.gmra.mrb[0].mxu0 %v120
  %v180 = vpop.f32.mrb[0].mxu0
  %v181 = vadd.f32 %v75, %v180
  %v182 = vpop.f32.mrb[0].mxu0
  %v183 = vpop.f32.mrb[0].mxu0
  %v184 = vadd.f32 %v75, %v183
  %v185 = vpop.f32.mrb[0].mxu0
  %186 = vdwg.mxu0
  %v187 = vpack.c.bf16 %v160, %v157
  %v188 = vpack.c.bf16 %v168, %v165
  %v189 = vpack.c.bf16 %v176, %v173
  %v190 = vpack.c.bf16 %v184, %v181
  %v207 = vunpack.c.l.b16 %v50
  %v208 = vunpack.c.l.b16 %v51
  %v209 = vunpack.c.l.b16 %v52
  %v210 = vunpack.c.l.b16 %v53
  %v211 = vunpack.c.l.b16 %v54
  %v212 = vunpack.c.l.b16 %v55
  %v213 = vunpack.c.l.b16 %v56
  %v214 = vunpack.c.l.b16 %v57
  %v215 = vunpack.c.l.b16 %v58
  %v216 = vunpack.c.l.b16 %v59
  %v217 = vunpack.c.l.b16 %v60
  %v218 = vunpack.c.l.b16 %v61
  %v219 = vunpack.c.l.b16 %v62
  %v220 = vunpack.c.l.b16 %v63
  %v221 = vunpack.c.l.b16 %v64
  %v222 = vunpack.c.l.b16 %v65
  %v223 = vpack.c.b16 %v208, %v207
  %v224 = vpack.c.b16 %v210, %v209
  %v225 = vpack.c.b16 %v212, %v211
  %v226 = vpack.c.b16 %v214, %v213
  %v227 = vpack.c.b16 %v216, %v215
  %v228 = vpack.c.b16 %v218, %v217
  %v229 = vpack.c.b16 %v220, %v219
  %v230 = vpack.c.b16 %v222, %v221
  %239 = vmatprep.subr.bf16.mxu0 0
  %240 = vmatpush1.bf16.msra.mxu0 %v223
  %241 = vmatprep.subr.bf16.mxu0 0
  %242 = vmatpush1.bf16.msra.mxu0 %v224
  %243 = vmatprep.subr.bf16.mxu0 0
  %244 = vmatpush1.bf16.msra.mxu0 %v225
  %245 = vmatprep.subr.bf16.mxu0 0
  %246 = vmatpush1.bf16.msra.mxu0 %v226
  %247 = vmatprep.subr.bf16.mxu0 0
  %248 = vmatpush1.bf16.msra.mxu0 %v227
  %249 = vmatprep.subr.bf16.mxu0 0
  %250 = vmatpush1.bf16.msra.mxu0 %v228
  %251 = vmatprep.subr.bf16.mxu0 0
  %252 = vmatpush1.bf16.msra.mxu0 %v229
  %253 = vmatprep.subr.bf16.mxu0 0
  %254 = vmatpush1.bf16.msra.mxu0 %v230
  %255 = vmatprep.subr.bf16.mxu0 0
  %256 = vmatpush1.bf16.msra.mxu0 0
  %257 = vmatprep.subr.bf16.mxu0 0
  %258 = vmatpush1.bf16.msra.mxu0 0
  %259 = vmatprep.subr.bf16.mxu0 0
  %260 = vmatpush1.bf16.msra.mxu0 0
  %261 = vmatprep.subr.bf16.mxu0 0
  %262 = vmatpush1.bf16.msra.mxu0 0
  %263 = vmatprep.subr.bf16.mxu0 0
  %264 = vmatpush1.bf16.msra.mxu0 0
  %265 = vmatprep.subr.bf16.mxu0 0
  %266 = vmatpush1.bf16.msra.mxu0 0
  %267 = vmatprep.subr.bf16.mxu0 0
  %268 = vmatpush1.bf16.msra.mxu0 0
  %269 = vmatprep.subr.bf16.mxu0 0
  %270 = vmatpush1.bf16.msra.mxu0 0
  %271 = vmatprep.mubr.bf16.mxu0 0
  %272 = vmatmul.mubr.bf16.gmra.mrb[0].mxu0 %v187
  %v273 = vpop.f32.mrb[0].mxu0
  %v274 = vadd.f32 0.0, %v273
  %v275 = vpop.f32.mrb[0].mxu0
  %v276 = vpop.f32.mrb[0].mxu0
  %v277 = vadd.f32 0.0, %v276
  %v278 = vpop.f32.mrb[0].mxu0
  %279 = vmatprep.mubr.bf16.mxu0 0
  %280 = vmatmul.mubr.bf16.gmra.mrb[0].mxu0 %v188
  %v281 = vpop.f32.mrb[0].mxu0
  %v282 = vadd.f32 0.0, %v281
  %v283 = vpop.f32.mrb[0].mxu0
  %v284 = vpop.f32.mrb[0].mxu0
  %v285 = vadd.f32 0.0, %v284
  %v286 = vpop.f32.mrb[0].mxu0
  %287 = vmatprep.mubr.bf16.mxu0 0
  %288 = vmatmul.mubr.bf16.gmra.mrb[0].mxu0 %v189
  %v289 = vpop.f32.mrb[0].mxu0
  %v290 = vadd.f32 0.0, %v289
  %v291 = vpop.f32.mrb[0].mxu0
  %v292 = vpop.f32.mrb[0].mxu0
  %v293 = vadd.f32 0.0, %v292
  %v294 = vpop.f32.mrb[0].mxu0
  %295 = vmatprep.mubr.bf16.mxu0 0
  %296 = vmatmul.mubr.bf16.gmra.mrb[0].mxu0 %v190
  %v297 = vpop.f32.mrb[0].mxu0
  %v298 = vadd.f32 0.0, %v297
  %v299 = vpop.f32.mrb[0].mxu0
  %v300 = vpop.f32.mrb[0].mxu0
  %v301 = vadd.f32 0.0, %v300
  %v302 = vpop.f32.mrb[0].mxu0
  %303 = vdwg.mxu0
  %v304 = vsub.f32 %v157, %v274
  %v305 = vsub.f32 %v160, %v277
  %v306 = vsub.f32 %v165, %v282
  %v307 = vsub.f32 %v168, %v285
  %v308 = vsub.f32 %v173, %v290
  %v309 = vsub.f32 %v176, %v293
  %v310 = vsub.f32 %v181, %v298
  %v311 = vsub.f32 %v184, %v301
  %v312 = vmul.f32 %v304, %v304
  %v313 = vmul.f32 %v305, %v305
  %v314 = vmul.f32 %v306, %v306
  %v315 = vmul.f32 %v307, %v307
  %v316 = vmul.f32 %v308, %v308
  %v317 = vmul.f32 %v309, %v309
  %v318 = vmul.f32 %v310, %v310
  %v319 = vmul.f32 %v311, %v311
  %v320 = vpack.c.bf16 %v313, %v312
  %v321 = vpack.c.bf16 %v315, %v314
  %v322 = vpack.c.bf16 %v317, %v316
  %v323 = vpack.c.bf16 %v319, %v318
  %v324 = vld [vmem:[%s4] sm:$0x1]
  %325 = vmatprep.subr.bf16.mxu0 0
  %326 = vmatpush1.bf16.msra.mxu0 %v223
  %327 = vmatprep.subr.bf16.mxu0 0
  %328 = vmatpush1.bf16.msra.mxu0 %v224
  %329 = vmatprep.subr.bf16.mxu0 0
  %330 = vmatpush1.bf16.msra.mxu0 %v225
  %331 = vmatprep.subr.bf16.mxu0 0
  %332 = vmatpush1.bf16.msra.mxu0 %v226
  %333 = vmatprep.subr.bf16.mxu0 0
  %334 = vmatpush1.bf16.msra.mxu0 %v227
  %335 = vmatprep.subr.bf16.mxu0 0
  %336 = vmatpush1.bf16.msra.mxu0 %v228
  %337 = vmatprep.subr.bf16.mxu0 0
  %338 = vmatpush1.bf16.msra.mxu0 %v229
  %339 = vmatprep.subr.bf16.mxu0 0
  %340 = vmatpush1.bf16.msra.mxu0 %v230
  %341 = vmatprep.subr.bf16.mxu0 0
  %342 = vmatpush1.bf16.msra.mxu0 0
  %343 = vmatprep.subr.bf16.mxu0 0
  %344 = vmatpush1.bf16.msra.mxu0 0
  %345 = vmatprep.subr.bf16.mxu0 0
  %346 = vmatpush1.bf16.msra.mxu0 0
  %347 = vmatprep.subr.bf16.mxu0 0
  %348 = vmatpush1.bf16.msra.mxu0 0
  %349 = vmatprep.subr.bf16.mxu0 0
  %350 = vmatpush1.bf16.msra.mxu0 0
  %351 = vmatprep.subr.bf16.mxu0 0
  %352 = vmatpush1.bf16.msra.mxu0 0
  %353 = vmatprep.subr.bf16.mxu0 0
  %354 = vmatpush1.bf16.msra.mxu0 0
  %355 = vmatprep.subr.bf16.mxu0 0
  %356 = vmatpush1.bf16.msra.mxu0 0
  %357 = vmatprep.mubr.bf16.mxu0 0
  %358 = vmatmul.mubr.bf16.gmra.mrb[0].mxu0 %v320
  %v359 = vpop.f32.mrb[0].mxu0
  %v360 = vadd.f32 1e-05, %v359
  %v361 = vpop.f32.mrb[0].mxu0
  %v362 = vpop.f32.mrb[0].mxu0
  %v363 = vadd.f32 1e-05, %v362
  %v364 = vpop.f32.mrb[0].mxu0
  %365 = vmatprep.mubr.bf16.mxu0 0
  %366 = vmatmul.mubr.bf16.gmra.mrb[0].mxu0 %v321
  %v367 = vpop.f32.mrb[0].mxu0
  %v368 = vadd.f32 1e-05, %v367
  %v369 = vpop.f32.mrb[0].mxu0
  %v370 = vpop.f32.mrb[0].mxu0
  %v371 = vadd.f32 1e-05, %v370
  %v372 = vpop.f32.mrb[0].mxu0
  %373 = vmatprep.mubr.bf16.mxu0 0
  %374 = vmatmul.mubr.bf16.gmra.mrb[0].mxu0 %v322
  %v375 = vpop.f32.mrb[0].mxu0
  %v376 = vadd.f32 1e-05, %v375
  %v377 = vpop.f32.mrb[0].mxu0
  %v378 = vpop.f32.mrb[0].mxu0
  %v379 = vadd.f32 1e-05, %v378
  %v380 = vpop.f32.mrb[0].mxu0
  %381 = vmatprep.mubr.bf16.mxu0 0
  %382 = vmatmul.mubr.bf16.gmra.mrb[0].mxu0 %v323
  %v383 = vpop.f32.mrb[0].mxu0
  %v384 = vadd.f32 1e-05, %v383
  %v385 = vpop.f32.mrb[0].mxu0
  %v386 = vpop.f32.mrb[0].mxu0
  %v387 = vadd.f32 1e-05, %v386
  %v388 = vpop.f32.mrb[0].mxu0
  %389 = vdwg.mxu0
  %v390 = vrsqrt.pop %v360
  %v391 = vrsqrt.pop %v363
  %v392 = vrsqrt.pop %v368
  %v393 = vrsqrt.pop %v371
  %v394 = vrsqrt.pop %v376
  %v395 = vrsqrt.pop %v379
  %v396 = vrsqrt.pop %v384
  %v397 = vrsqrt.pop %v387
  %v399 = vlaneseq
  %v400 = vshrl.u32 %v399, 7
  %v401 = vsub.s32 0, %v400
  %v402 = vrot.slane %v324, %v401
  %v404 = vmul.f32 %v402, %v390
  %v405 = vmul.f32 %v402, %v391
  %v406 = vmul.f32 %v402, %v392
  %v407 = vmul.f32 %v402, %v393
  %v408 = vmul.f32 %v402, %v394
  %v409 = vmul.f32 %v402, %v395
  %v410 = vmul.f32 %v402, %v396
  %v411 = vmul.f32 %v402, %v397
  %v412 = vmul.f32 %v304, %v404
  %v413 = vmul.f32 %v305, %v405
  %v414 = vmul.f32 %v306, %v406
  %v415 = vmul.f32 %v307, %v407
  %v416 = vmul.f32 %v308, %v408
  %v417 = vmul.f32 %v309, %v409
  %v418 = vmul.f32 %v310, %v410
  %v419 = vmul.f32 %v311, %v411
  %v420 = vld [vmem:[%s5] sm:$0x1]
  %v422 = vlaneseq
  %v423 = vshrl.u32 %v422, 7
  %v424 = vsub.s32 0, %v423
  %v425 = vrot.slane %v420, %v424
  %v427 = vadd.f32 %v412, %v425
  %v428 = vadd.f32 %v413, %v425
  %v429 = vadd.f32 %v414, %v425
  %v430 = vadd.f32 %v415, %v425
  %v431 = vadd.f32 %v416, %v425
  %v432 = vadd.f32 %v417, %v425
  %v433 = vadd.f32 %v418, %v425
  %v434 = vadd.f32 %v419, %v425
  %v435 = vmin.f32 %v427, 20.0
  %v436 = vmin.f32 %v428, 20.0
  %v437 = vmin.f32 %v429, 20.0
  %v438 = vmin.f32 %v430, 20.0
  %v439 = vmin.f32 %v431, 20.0
  %v440 = vmin.f32 %v432, 20.0
  %v441 = vmin.f32 %v433, 20.0
  %v442 = vmin.f32 %v434, 20.0
  %v443 = vmul.f32 %v435, 1.442695
  %v444 = vpow.pop %v443
  %v445 = vmul.f32 %v436, 1.442695
  %v446 = vpow.pop %v445
  %v447 = vmul.f32 %v437, 1.442695
  %v448 = vpow.pop %v447
  %v449 = vmul.f32 %v438, 1.442695
  %v450 = vpow.pop %v449
  %v451 = vmul.f32 %v439, 1.442695
  %v452 = vpow.pop %v451
  %v453 = vmul.f32 %v440, 1.442695
  %v454 = vpow.pop %v453
  %v455 = vmul.f32 %v441, 1.442695
  %v456 = vpow.pop %v455
  %v457 = vmul.f32 %v442, 1.442695
  %v458 = vpow.pop %v457
  %v459 = vadd.f32 %v444, 2.0
  %v460 = vadd.f32 %v446, 2.0
  %v461 = vadd.f32 %v448, 2.0
  %v462 = vadd.f32 %v450, 2.0
  %v463 = vadd.f32 %v452, 2.0
  %v464 = vadd.f32 %v454, 2.0
  %v465 = vadd.f32 %v456, 2.0
  %v466 = vadd.f32 %v458, 2.0
  %v467 = vmul.f32 %v444, %v459
  %v468 = vmul.f32 %v446, %v460
  %v469 = vmul.f32 %v448, %v461
  %v470 = vmul.f32 %v450, %v462
  %v471 = vmul.f32 %v452, %v463
  %v472 = vmul.f32 %v454, %v464
  %v473 = vmul.f32 %v456, %v465
  %v474 = vmul.f32 %v458, %v466
  %v475 = vadd.f32 %v467, 2.0
  %v476 = vadd.f32 %v468, 2.0
  %v477 = vadd.f32 %v469, 2.0
  %v478 = vadd.f32 %v470, 2.0
  %v479 = vadd.f32 %v471, 2.0
  %v480 = vadd.f32 %v472, 2.0
  %v481 = vadd.f32 %v473, 2.0
  %v482 = vadd.f32 %v474, 2.0
  %v483 = vrcp.pop %v475
  %v484 = vmul.f32 %v467, %v483
  %v485 = vrcp.pop %v476
  %v486 = vmul.f32 %v468, %v485
  %v487 = vrcp.pop %v477
  %v488 = vmul.f32 %v469, %v487
  %v489 = vrcp.pop %v478
  %v490 = vmul.f32 %v470, %v489
  %v491 = vrcp.pop %v479
  %v492 = vmul.f32 %v471, %v491
  %v493 = vrcp.pop %v480
  %v494 = vmul.f32 %v472, %v493
  %v495 = vrcp.pop %v481
  %v496 = vmul.f32 %v473, %v495
  %v497 = vrcp.pop %v482
  %v498 = vmul.f32 %v474, %v497
  %v499 = vmul.f32 %v427, %v484
  %v500 = vmul.f32 %v428, %v486
  %v501 = vmul.f32 %v429, %v488
  %v502 = vmul.f32 %v430, %v490
  %v503 = vmul.f32 %v431, %v492
  %v504 = vmul.f32 %v432, %v494
  %v505 = vmul.f32 %v433, %v496
  %v506 = vmul.f32 %v434, %v498
  %v507 = vpack.c.bf16 %v500, %v499
  %v508 = vpack.c.bf16 %v502, %v501
  %v509 = vpack.c.bf16 %v504, %v503
  %v510 = vpack.c.bf16 %v506, %v505
  %v511 = vld [vmem:[%s6] sm:$0xf]
  %v512 = vld [vmem:[%s6 + $0x4] sm:$0xf]
  %v513 = vld [vmem:[%s6 + $0x8] sm:$0xf]
  %v514 = vld [vmem:[%s6 + $0xc] sm:$0xf]
  %v515 = vld [vmem:[%s6 + $0x10] sm:$0xf]
  %v516 = vld [vmem:[%s6 + $0x14] sm:$0xf]
  %v517 = vld [vmem:[%s6 + $0x18] sm:$0xf]
  %v518 = vld [vmem:[%s6 + $0x1c] sm:$0xf]
  %v519 = vld [vmem:[%s6 + $0x20] sm:$0xf]
  %v520 = vld [vmem:[%s6 + $0x24] sm:$0xf]
  %v521 = vld [vmem:[%s6 + $0x28] sm:$0xf]
  %v522 = vld [vmem:[%s6 + $0x2c] sm:$0xf]
  %v523 = vld [vmem:[%s6 + $0x30] sm:$0xf]
  %v524 = vld [vmem:[%s6 + $0x34] sm:$0xf]
  %v525 = vld [vmem:[%s6 + $0x38] sm:$0xf]
  %v526 = vld [vmem:[%s6 + $0x3c] sm:$0xf]
  %v527 = vld [vmem:[%s7] sm:$0x1]
  %v529 = vlaneseq
  %v530 = vshrl.u32 %v529, 7
  %v531 = vsub.s32 0, %v530
  %v532 = vrot.slane %v527, %v531
  %v550 = vunpack.c.l.b16 %v511
  %v551 = vunpack.c.l.b16 %v512
  %v552 = vunpack.c.l.b16 %v513
  %v553 = vunpack.c.l.b16 %v514
  %v554 = vunpack.c.l.b16 %v515
  %v555 = vunpack.c.l.b16 %v516
  %v556 = vunpack.c.l.b16 %v517
  %v557 = vunpack.c.l.b16 %v518
  %v558 = vunpack.c.l.b16 %v519
  %v559 = vunpack.c.l.b16 %v520
  %v560 = vunpack.c.l.b16 %v521
  %v561 = vunpack.c.l.b16 %v522
  %v562 = vunpack.c.l.b16 %v523
  %v563 = vunpack.c.l.b16 %v524
  %v564 = vunpack.c.l.b16 %v525
  %v565 = vunpack.c.l.b16 %v526
  %v566 = vpack.c.b16 %v551, %v550
  %v567 = vpack.c.b16 %v553, %v552
  %v568 = vpack.c.b16 %v555, %v554
  %v569 = vpack.c.b16 %v557, %v556
  %v570 = vpack.c.b16 %v559, %v558
  %v571 = vpack.c.b16 %v561, %v560
  %v572 = vpack.c.b16 %v563, %v562
  %v573 = vpack.c.b16 %v565, %v564
  %582 = vmatprep.subr.bf16.mxu0 0
  %583 = vmatpush1.bf16.msra.mxu0 %v566
  %584 = vmatprep.subr.bf16.mxu0 0
  %585 = vmatpush1.bf16.msra.mxu0 %v567
  %586 = vmatprep.subr.bf16.mxu0 0
  %587 = vmatpush1.bf16.msra.mxu0 %v568
  %588 = vmatprep.subr.bf16.mxu0 0
  %589 = vmatpush1.bf16.msra.mxu0 %v569
  %590 = vmatprep.subr.bf16.mxu0 0
  %591 = vmatpush1.bf16.msra.mxu0 %v570
  %592 = vmatprep.subr.bf16.mxu0 0
  %593 = vmatpush1.bf16.msra.mxu0 %v571
  %594 = vmatprep.subr.bf16.mxu0 0
  %595 = vmatpush1.bf16.msra.mxu0 %v572
  %596 = vmatprep.subr.bf16.mxu0 0
  %597 = vmatpush1.bf16.msra.mxu0 %v573
  %598 = vmatprep.subr.bf16.mxu0 0
  %599 = vmatpush1.bf16.msra.mxu0 0
  %600 = vmatprep.subr.bf16.mxu0 0
  %601 = vmatpush1.bf16.msra.mxu0 0
  %602 = vmatprep.subr.bf16.mxu0 0
  %603 = vmatpush1.bf16.msra.mxu0 0
  %604 = vmatprep.subr.bf16.mxu0 0
  %605 = vmatpush1.bf16.msra.mxu0 0
  %606 = vmatprep.subr.bf16.mxu0 0
  %607 = vmatpush1.bf16.msra.mxu0 0
  %608 = vmatprep.subr.bf16.mxu0 0
  %609 = vmatpush1.bf16.msra.mxu0 0
  %610 = vmatprep.subr.bf16.mxu0 0
  %611 = vmatpush1.bf16.msra.mxu0 0
  %612 = vmatprep.subr.bf16.mxu0 0
  %613 = vmatpush1.bf16.msra.mxu0 0
  %614 = vmatprep.mubr.bf16.mxu0 0
  %615 = vmatmul.mubr.bf16.gmra.mrb[0].mxu0 %v507
  %v616 = vpop.f32.mrb[0].mxu0
  %v617 = vadd.f32 %v532, %v616
  %v618 = vpop.f32.mrb[0].mxu0
  %v619 = vpop.f32.mrb[0].mxu0
  %v620 = vadd.f32 %v532, %v619
  %v621 = vpop.f32.mrb[0].mxu0
  %622 = vmatprep.mubr.bf16.mxu0 0
  %623 = vmatmul.mubr.bf16.gmra.mrb[0].mxu0 %v508
  %v624 = vpop.f32.mrb[0].mxu0
  %v625 = vadd.f32 %v532, %v624
  %v626 = vpop.f32.mrb[0].mxu0
  %v627 = vpop.f32.mrb[0].mxu0
  %v628 = vadd.f32 %v532, %v627
  %v629 = vpop.f32.mrb[0].mxu0
  %630 = vmatprep.mubr.bf16.mxu0 0
  %631 = vmatmul.mubr.bf16.gmra.mrb[0].mxu0 %v509
  %v632 = vpop.f32.mrb[0].mxu0
  %v633 = vadd.f32 %v532, %v632
  %v634 = vpop.f32.mrb[0].mxu0
  %v635 = vpop.f32.mrb[0].mxu0
  %v636 = vadd.f32 %v532, %v635
  %v637 = vpop.f32.mrb[0].mxu0
  %638 = vmatprep.mubr.bf16.mxu0 0
  %639 = vmatmul.mubr.bf16.gmra.mrb[0].mxu0 %v510
  %v640 = vpop.f32.mrb[0].mxu0
  %v641 = vadd.f32 %v532, %v640
  %v642 = vpop.f32.mrb[0].mxu0
  %v643 = vpop.f32.mrb[0].mxu0
  %v644 = vadd.f32 %v532, %v643
  %v645 = vpop.f32.mrb[0].mxu0
  %646 = vdwg.mxu0
  %v647 = vpack.c.bf16 %v620, %v617
  %v648 = vpack.c.bf16 %v628, %v625
  %v649 = vpack.c.bf16 %v636, %v633
  %v650 = vpack.c.bf16 %v644, %v641
  %651 = vmatprep.subr.bf16.mxu0 0
  %652 = vmatpush1.bf16.msra.mxu0 %v223
  %653 = vmatprep.subr.bf16.mxu0 0
  %654 = vmatpush1.bf16.msra.mxu0 %v224
  %655 = vmatprep.subr.bf16.mxu0 0
  %656 = vmatpush1.bf16.msra.mxu0 %v225
  %657 = vmatprep.subr.bf16.mxu0 0
  %658 = vmatpush1.bf16.msra.mxu0 %v226
  %659 = vmatprep.subr.bf16.mxu0 0
  %660 = vmatpush1.bf16.msra.mxu0 %v227
  %661 = vmatprep.subr.bf16.mxu0 0
  %662 = vmatpush1.bf16.msra.mxu0 %v228
  %663 = vmatprep.subr.bf16.mxu0 0
  %664 = vmatpush1.bf16.msra.mxu0 %v229
  %665 = vmatprep.subr.bf16.mxu0 0
  %666 = vmatpush1.bf16.msra.mxu0 %v230
  %667 = vmatprep.subr.bf16.mxu0 0
  %668 = vmatpush1.bf16.msra.mxu0 0
  %669 = vmatprep.subr.bf16.mxu0 0
  %670 = vmatpush1.bf16.msra.mxu0 0
  %671 = vmatprep.subr.bf16.mxu0 0
  %672 = vmatpush1.bf16.msra.mxu0 0
  %673 = vmatprep.subr.bf16.mxu0 0
  %674 = vmatpush1.bf16.msra.mxu0 0
  %675 = vmatprep.subr.bf16.mxu0 0
  %676 = vmatpush1.bf16.msra.mxu0 0
  %677 = vmatprep.subr.bf16.mxu0 0
  %678 = vmatpush1.bf16.msra.mxu0 0
  %679 = vmatprep.subr.bf16.mxu0 0
  %680 = vmatpush1.bf16.msra.mxu0 0
  %681 = vmatprep.subr.bf16.mxu0 0
  %682 = vmatpush1.bf16.msra.mxu0 0
  %683 = vmatprep.mubr.bf16.mxu0 0
  %684 = vmatmul.mubr.bf16.gmra.mrb[0].mxu0 %v647
  %v685 = vpop.f32.mrb[0].mxu0
  %v686 = vadd.f32 0.0, %v685
  %v687 = vpop.f32.mrb[0].mxu0
  %v688 = vpop.f32.mrb[0].mxu0
  %v689 = vadd.f32 0.0, %v688
  %v690 = vpop.f32.mrb[0].mxu0
  %691 = vmatprep.mubr.bf16.mxu0 0
  %692 = vmatmul.mubr.bf16.gmra.mrb[0].mxu0 %v648
  %v693 = vpop.f32.mrb[0].mxu0
  %v694 = vadd.f32 0.0, %v693
  %v695 = vpop.f32.mrb[0].mxu0
  %v696 = vpop.f32.mrb[0].mxu0
  %v697 = vadd.f32 0.0, %v696
  %v698 = vpop.f32.mrb[0].mxu0
  %699 = vmatprep.mubr.bf16.mxu0 0
  %700 = vmatmul.mubr.bf16.gmra.mrb[0].mxu0 %v649
  %v701 = vpop.f32.mrb[0].mxu0
  %v702 = vadd.f32 0.0, %v701
  %v703 = vpop.f32.mrb[0].mxu0
  %v704 = vpop.f32.mrb[0].mxu0
  %v705 = vadd.f32 0.0, %v704
  %v706 = vpop.f32.mrb[0].mxu0
  %707 = vmatprep.mubr.bf16.mxu0 0
  %708 = vmatmul.mubr.bf16.gmra.mrb[0].mxu0 %v650
  %v709 = vpop.f32.mrb[0].mxu0
  %v710 = vadd.f32 0.0, %v709
  %v711 = vpop.f32.mrb[0].mxu0
  %v712 = vpop.f32.mrb[0].mxu0
  %v713 = vadd.f32 0.0, %v712
  %v714 = vpop.f32.mrb[0].mxu0
  %715 = vdwg.mxu0
  %v716 = vsub.f32 %v617, %v686
  %v717 = vsub.f32 %v620, %v689
  %v718 = vsub.f32 %v625, %v694
  %v719 = vsub.f32 %v628, %v697
  %v720 = vsub.f32 %v633, %v702
  %v721 = vsub.f32 %v636, %v705
  %v722 = vsub.f32 %v641, %v710
  %v723 = vsub.f32 %v644, %v713
  %v724 = vmul.f32 %v716, %v716
  %v725 = vmul.f32 %v717, %v717
  %v726 = vmul.f32 %v718, %v718
  %v727 = vmul.f32 %v719, %v719
  %v728 = vmul.f32 %v720, %v720
  %v729 = vmul.f32 %v721, %v721
  %v730 = vmul.f32 %v722, %v722
  %v731 = vmul.f32 %v723, %v723
  %v732 = vpack.c.bf16 %v725, %v724
  %v733 = vpack.c.bf16 %v727, %v726
  %v734 = vpack.c.bf16 %v729, %v728
  %v735 = vpack.c.bf16 %v731, %v730
  %v736 = vld [vmem:[%s8] sm:$0x1]
  %737 = vmatprep.subr.bf16.mxu0 0
  %738 = vmatpush1.bf16.msra.mxu0 %v223
  %739 = vmatprep.subr.bf16.mxu0 0
  %740 = vmatpush1.bf16.msra.mxu0 %v224
  %741 = vmatprep.subr.bf16.mxu0 0
  %742 = vmatpush1.bf16.msra.mxu0 %v225
  %743 = vmatprep.subr.bf16.mxu0 0
  %744 = vmatpush1.bf16.msra.mxu0 %v226
  %745 = vmatprep.subr.bf16.mxu0 0
  %746 = vmatpush1.bf16.msra.mxu0 %v227
  %747 = vmatprep.subr.bf16.mxu0 0
  %748 = vmatpush1.bf16.msra.mxu0 %v228
  %749 = vmatprep.subr.bf16.mxu0 0
  %750 = vmatpush1.bf16.msra.mxu0 %v229
  %751 = vmatprep.subr.bf16.mxu0 0
  %752 = vmatpush1.bf16.msra.mxu0 %v230
  %753 = vmatprep.subr.bf16.mxu0 0
  %754 = vmatpush1.bf16.msra.mxu0 0
  %755 = vmatprep.subr.bf16.mxu0 0
  %756 = vmatpush1.bf16.msra.mxu0 0
  %757 = vmatprep.subr.bf16.mxu0 0
  %758 = vmatpush1.bf16.msra.mxu0 0
  %759 = vmatprep.subr.bf16.mxu0 0
  %760 = vmatpush1.bf16.msra.mxu0 0
  %761 = vmatprep.subr.bf16.mxu0 0
  %762 = vmatpush1.bf16.msra.mxu0 0
  %763 = vmatprep.subr.bf16.mxu0 0
  %764 = vmatpush1.bf16.msra.mxu0 0
  %765 = vmatprep.subr.bf16.mxu0 0
  %766 = vmatpush1.bf16.msra.mxu0 0
  %767 = vmatprep.subr.bf16.mxu0 0
  %768 = vmatpush1.bf16.msra.mxu0 0
  %769 = vmatprep.mubr.bf16.mxu0 0
  %770 = vmatmul.mubr.bf16.gmra.mrb[0].mxu0 %v732
  %v771 = vpop.f32.mrb[0].mxu0
  %v772 = vadd.f32 1e-05, %v771
  %v773 = vpop.f32.mrb[0].mxu0
  %v774 = vpop.f32.mrb[0].mxu0
  %v775 = vadd.f32 1e-05, %v774
  %v776 = vpop.f32.mrb[0].mxu0
  %777 = vmatprep.mubr.bf16.mxu0 0
  %778 = vmatmul.mubr.bf16.gmra.mrb[0].mxu0 %v733
  %v779 = vpop.f32.mrb[0].mxu0
  %v780 = vadd.f32 1e-05, %v779
  %v781 = vpop.f32.mrb[0].mxu0
  %v782 = vpop.f32.mrb[0].mxu0
  %v783 = vadd.f32 1e-05, %v782
  %v784 = vpop.f32.mrb[0].mxu0
  %785 = vmatprep.mubr.bf16.mxu0 0
  %786 = vmatmul.mubr.bf16.gmra.mrb[0].mxu0 %v734
  %v787 = vpop.f32.mrb[0].mxu0
  %v788 = vadd.f32 1e-05, %v787
  %v789 = vpop.f32.mrb[0].mxu0
  %v790 = vpop.f32.mrb[0].mxu0
  %v791 = vadd.f32 1e-05, %v790
  %v792 = vpop.f32.mrb[0].mxu0
  %793 = vmatprep.mubr.bf16.mxu0 0
  %794 = vmatmul.mubr.bf16.gmra.mrb[0].mxu0 %v735
  %v795 = vpop.f32.mrb[0].mxu0
  %v796 = vadd.f32 1e-05, %v795
  %v797 = vpop.f32.mrb[0].mxu0
  %v798 = vpop.f32.mrb[0].mxu0
  %v799 = vadd.f32 1e-05, %v798
  %v800 = vpop.f32.mrb[0].mxu0
  %801 = vdwg.mxu0
  %v802 = vrsqrt.pop %v772
  %v803 = vrsqrt.pop %v775
  %v804 = vrsqrt.pop %v780
  %v805 = vrsqrt.pop %v783
  %v806 = vrsqrt.pop %v788
  %v807 = vrsqrt.pop %v791
  %v808 = vrsqrt.pop %v796
  %v809 = vrsqrt.pop %v799
  %v811 = vlaneseq
  %v812 = vshrl.u32 %v811, 7
  %v813 = vsub.s32 0, %v812
  %v814 = vrot.slane %v736, %v813
  %v816 = vmul.f32 %v814, %v802
  %v817 = vmul.f32 %v814, %v803
  %v818 = vmul.f32 %v814, %v804
  %v819 = vmul.f32 %v814, %v805
  %v820 = vmul.f32 %v814, %v806
  %v821 = vmul.f32 %v814, %v807
  %v822 = vmul.f32 %v814, %v808
  %v823 = vmul.f32 %v814, %v809
  %v824 = vmul.f32 %v716, %v816
  %v825 = vmul.f32 %v717, %v817
  %v826 = vmul.f32 %v718, %v818
  %v827 = vmul.f32 %v719, %v819
  %v828 = vmul.f32 %v720, %v820
  %v829 = vmul.f32 %v721, %v821
  %v830 = vmul.f32 %v722, %v822
  %v831 = vmul.f32 %v723, %v823
  %v832 = vld [vmem:[%s9] sm:$0x1]
  %v834 = vlaneseq
  %v835 = vshrl.u32 %v834, 7
  %v836 = vsub.s32 0, %v835
  %v837 = vrot.slane %v832, %v836
  %v839 = vadd.f32 %v824, %v837
  %v840 = vadd.f32 %v825, %v837
  %v841 = vadd.f32 %v826, %v837
  %v842 = vadd.f32 %v827, %v837
  %v843 = vadd.f32 %v828, %v837
  %v844 = vadd.f32 %v829, %v837
  %v845 = vadd.f32 %v830, %v837
  %v846 = vadd.f32 %v831, %v837
  %v847 = vmin.f32 %v839, 20.0
  %v848 = vmin.f32 %v840, 20.0
  %v849 = vmin.f32 %v841, 20.0
  %v850 = vmin.f32 %v842, 20.0
  %v851 = vmin.f32 %v843, 20.0
  %v852 = vmin.f32 %v844, 20.0
  %v853 = vmin.f32 %v845, 20.0
  %v854 = vmin.f32 %v846, 20.0
  %v855 = vmul.f32 %v847, 1.442695
  %v856 = vpow.pop %v855
  %v857 = vmul.f32 %v848, 1.442695
  %v858 = vpow.pop %v857
  %v859 = vmul.f32 %v849, 1.442695
  %v860 = vpow.pop %v859
  %v861 = vmul.f32 %v850, 1.442695
  %v862 = vpow.pop %v861
  %v863 = vmul.f32 %v851, 1.442695
  %v864 = vpow.pop %v863
  %v865 = vmul.f32 %v852, 1.442695
  %v866 = vpow.pop %v865
  %v867 = vmul.f32 %v853, 1.442695
  %v868 = vpow.pop %v867
  %v869 = vmul.f32 %v854, 1.442695
  %v870 = vpow.pop %v869
  %v871 = vadd.f32 %v856, 2.0
  %v872 = vadd.f32 %v858, 2.0
  %v873 = vadd.f32 %v860, 2.0
  %v874 = vadd.f32 %v862, 2.0
  %v875 = vadd.f32 %v864, 2.0
  %v876 = vadd.f32 %v866, 2.0
  %v877 = vadd.f32 %v868, 2.0
  %v878 = vadd.f32 %v870, 2.0
  %v879 = vmul.f32 %v856, %v871
  %v880 = vmul.f32 %v858, %v872
  %v881 = vmul.f32 %v860, %v873
  %v882 = vmul.f32 %v862, %v874
  %v883 = vmul.f32 %v864, %v875
  %v884 = vmul.f32 %v866, %v876
  %v885 = vmul.f32 %v868, %v877
  %v886 = vmul.f32 %v870, %v878
  %v887 = vadd.f32 %v879, 2.0
  %v888 = vadd.f32 %v880, 2.0
  %v889 = vadd.f32 %v881, 2.0
  %v890 = vadd.f32 %v882, 2.0
  %v891 = vadd.f32 %v883, 2.0
  %v892 = vadd.f32 %v884, 2.0
  %v893 = vadd.f32 %v885, 2.0
  %v894 = vadd.f32 %v886, 2.0
  %v895 = vrcp.pop %v887
  %v896 = vmul.f32 %v879, %v895
  %v897 = vrcp.pop %v888
  %v898 = vmul.f32 %v880, %v897
  %v899 = vrcp.pop %v889
  %v900 = vmul.f32 %v881, %v899
  %v901 = vrcp.pop %v890
  %v902 = vmul.f32 %v882, %v901
  %v903 = vrcp.pop %v891
  %v904 = vmul.f32 %v883, %v903
  %v905 = vrcp.pop %v892
  %v906 = vmul.f32 %v884, %v905
  %v907 = vrcp.pop %v893
  %v908 = vmul.f32 %v885, %v907
  %v909 = vrcp.pop %v894
  %v910 = vmul.f32 %v886, %v909
  %v911 = vmul.f32 %v839, %v896
  %v912 = vmul.f32 %v840, %v898
  %v913 = vmul.f32 %v841, %v900
  %v914 = vmul.f32 %v842, %v902
  %v915 = vmul.f32 %v843, %v904
  %v916 = vmul.f32 %v844, %v906
  %v917 = vmul.f32 %v845, %v908
  %v918 = vmul.f32 %v846, %v910
  %v919 = vpack.c.bf16 %v912, %v911
  %v920 = vpack.c.bf16 %v914, %v913
  %v921 = vpack.c.bf16 %v916, %v915
  %v922 = vpack.c.bf16 %v918, %v917
  %v923 = vld [vmem:[%s10] sm:$0xf]
  %v924 = vld [vmem:[%s10 + $0x4] sm:$0xf]
  %v925 = vld [vmem:[%s10 + $0x8] sm:$0xf]
  %v926 = vld [vmem:[%s10 + $0xc] sm:$0xf]
  %v927 = vld [vmem:[%s10 + $0x10] sm:$0xf]
  %v928 = vld [vmem:[%s10 + $0x14] sm:$0xf]
  %v929 = vld [vmem:[%s10 + $0x18] sm:$0xf]
  %v930 = vld [vmem:[%s10 + $0x1c] sm:$0xf]
  %v931 = vld [vmem:[%s10 + $0x20] sm:$0xf]
  %v932 = vld [vmem:[%s10 + $0x24] sm:$0xf]
  %v933 = vld [vmem:[%s10 + $0x28] sm:$0xf]
  %v934 = vld [vmem:[%s10 + $0x2c] sm:$0xf]
  %v935 = vld [vmem:[%s10 + $0x30] sm:$0xf]
  %v936 = vld [vmem:[%s10 + $0x34] sm:$0xf]
  %v937 = vld [vmem:[%s10 + $0x38] sm:$0xf]
  %v938 = vld [vmem:[%s10 + $0x3c] sm:$0xf]
  %v939 = vld [vmem:[%s11] sm:$0x1]
  %v941 = vlaneseq
  %v942 = vshrl.u32 %v941, 7
  %v943 = vsub.s32 0, %v942
  %v944 = vrot.slane %v939, %v943
  %v962 = vunpack.c.l.b16 %v923
  %v963 = vunpack.c.l.b16 %v924
  %v964 = vunpack.c.l.b16 %v925
  %v965 = vunpack.c.l.b16 %v926
  %v966 = vunpack.c.l.b16 %v927
  %v967 = vunpack.c.l.b16 %v928
  %v968 = vunpack.c.l.b16 %v929
  %v969 = vunpack.c.l.b16 %v930
  %v970 = vunpack.c.l.b16 %v931
  %v971 = vunpack.c.l.b16 %v932
  %v972 = vunpack.c.l.b16 %v933
  %v973 = vunpack.c.l.b16 %v934
  %v974 = vunpack.c.l.b16 %v935
  %v975 = vunpack.c.l.b16 %v936
  %v976 = vunpack.c.l.b16 %v937
  %v977 = vunpack.c.l.b16 %v938
  %v978 = vpack.c.b16 %v963, %v962
  %v979 = vpack.c.b16 %v965, %v964
  %v980 = vpack.c.b16 %v967, %v966
  %v981 = vpack.c.b16 %v969, %v968
  %v982 = vpack.c.b16 %v971, %v970
  %v983 = vpack.c.b16 %v973, %v972
  %v984 = vpack.c.b16 %v975, %v974
  %v985 = vpack.c.b16 %v977, %v976
  %994 = vmatprep.subr.bf16.mxu0 0
  %995 = vmatpush1.bf16.msra.mxu0 %v978
  %996 = vmatprep.subr.bf16.mxu0 0
  %997 = vmatpush1.bf16.msra.mxu0 %v979
  %998 = vmatprep.subr.bf16.mxu0 0
  %999 = vmatpush1.bf16.msra.mxu0 %v980
  %1000 = vmatprep.subr.bf16.mxu0 0
  %1001 = vmatpush1.bf16.msra.mxu0 %v981
  %1002 = vmatprep.subr.bf16.mxu0 0
  %1003 = vmatpush1.bf16.msra.mxu0 %v982
  %1004 = vmatprep.subr.bf16.mxu0 0
  %1005 = vmatpush1.bf16.msra.mxu0 %v983
  %1006 = vmatprep.subr.bf16.mxu0 0
  %1007 = vmatpush1.bf16.msra.mxu0 %v984
  %1008 = vmatprep.subr.bf16.mxu0 0
  %1009 = vmatpush1.bf16.msra.mxu0 %v985
  %1010 = vmatprep.subr.bf16.mxu0 0
  %1011 = vmatpush1.bf16.msra.mxu0 0
  %1012 = vmatprep.subr.bf16.mxu0 0
  %1013 = vmatpush1.bf16.msra.mxu0 0
  %1014 = vmatprep.subr.bf16.mxu0 0
  %1015 = vmatpush1.bf16.msra.mxu0 0
  %1016 = vmatprep.subr.bf16.mxu0 0
  %1017 = vmatpush1.bf16.msra.mxu0 0
  %1018 = vmatprep.subr.bf16.mxu0 0
  %1019 = vmatpush1.bf16.msra.mxu0 0
  %1020 = vmatprep.subr.bf16.mxu0 0
  %1021 = vmatpush1.bf16.msra.mxu0 0
  %1022 = vmatprep.subr.bf16.mxu0 0
  %1023 = vmatpush1.bf16.msra.mxu0 0
  %1024 = vmatprep.subr.bf16.mxu0 0
  %1025 = vmatpush1.bf16.msra.mxu0 0
  %1026 = vmatprep.mubr.bf16.mxu0 0
  %1027 = vmatmul.mubr.bf16.gmra.mrb[0].mxu0 %v919
  %v1028 = vpop.f32.mrb[0].mxu0
  %v1029 = vadd.f32 %v944, %v1028
  %v1030 = vpop.f32.mrb[0].mxu0
  %v1031 = vpop.f32.mrb[0].mxu0
  %v1032 = vadd.f32 %v944, %v1031
  %v1033 = vpop.f32.mrb[0].mxu0
  %1034 = vmatprep.mubr.bf16.mxu0 0
  %1035 = vmatmul.mubr.bf16.gmra.mrb[0].mxu0 %v920
  %v1036 = vpop.f32.mrb[0].mxu0
  %v1037 = vadd.f32 %v944, %v1036
  %v1038 = vpop.f32.mrb[0].mxu0
  %v1039 = vpop.f32.mrb[0].mxu0
  %v1040 = vadd.f32 %v944, %v1039
  %v1041 = vpop.f32.mrb[0].mxu0
  %1042 = vmatprep.mubr.bf16.mxu0 0
  %1043 = vmatmul.mubr.bf16.gmra.mrb[0].mxu0 %v921
  %v1044 = vpop.f32.mrb[0].mxu0
  %v1045 = vadd.f32 %v944, %v1044
  %v1046 = vpop.f32.mrb[0].mxu0
  %v1047 = vpop.f32.mrb[0].mxu0
  %v1048 = vadd.f32 %v944, %v1047
  %v1049 = vpop.f32.mrb[0].mxu0
  %1050 = vmatprep.mubr.bf16.mxu0 0
  %1051 = vmatmul.mubr.bf16.gmra.mrb[0].mxu0 %v922
  %v1052 = vpop.f32.mrb[0].mxu0
  %v1053 = vadd.f32 %v944, %v1052
  %v1054 = vpop.f32.mrb[0].mxu0
  %v1055 = vpop.f32.mrb[0].mxu0
  %v1056 = vadd.f32 %v944, %v1055
  %v1057 = vpop.f32.mrb[0].mxu0
  %1058 = vdwg.mxu0
  %1059 = vst [vmem:[%s12] sm:$0xff] %v1029
  %1060 = vst [vmem:[%s12 + $0x8] sm:$0xff] %v1032
  %1061 = vst [vmem:[%s12 + $0x10] sm:$0xff] %v1037
  %1062 = vst [vmem:[%s12 + $0x18] sm:$0xff] %v1040
  %1063 = vst [vmem:[%s12 + $0x20] sm:$0xff] %v1045
  %1064 = vst [vmem:[%s12 + $0x28] sm:$0xff] %v1048
  %1065 = vst [vmem:[%s12 + $0x30] sm:$0xff] %v1053
  %1066 = vst [vmem:[%s12 + $0x38] sm:$0xff] %v1056
  // Predicated region
  $region50: #{mlp_forward_pallas.1} parent=0 // pred_check
    _
  $region51: #{mlp_forward_pallas.1} parent=0 // pred_check_branch
    %1068 = sbr.rel (0) target = $region53
  $region52: #{mlp_forward_pallas.1} parent=0 // pred_region
    _
  $region53: #{mlp_forward_pallas.1} parent=0 // pred_fallthru
    _
  // Predicated region
  $region54: #{mlp_forward_pallas.1} parent=0 // pred_check
    _
  $region55: #{mlp_forward_pallas.1} parent=0 // pred_check_branch
    %1070 = sbr.rel (0) target = $region57
  $region56: #{mlp_forward_pallas.1} parent=0 // pred_region
    _
  $region57: #{mlp_forward_pallas.1} parent=0 // pred_fallthru
    _

</llo_original>
